<compile_context>
chip_gen: v5e
topology: v5e:2x2
jax: 0.10.0
libtpu: 0.0.40
codegen_flags: <defaults>
</compile_context>

<pallas_src>
import functools

import jax
import jax.numpy as jnp
from jax.experimental import pallas as pl
from jax.experimental.pallas import tpu as pltpu


def lstm_kernel(tok_ref, params_ref, out_ref, *, S, Bp, H, Vp):
    # tok_ref:    (S*Bp, 1) int32, time-major flattened (row = t*Bp + b)
    # params_ref: (Vp + H + 1, 4H) f32 slab:
    #   rows [0:Vp]        fused table  emb @ W_ih^T + b   (g cols pre-scaled x2)
    #   rows [Vp:Vp+H]     W_hh^T                          (g cols pre-scaled x2)
    #   row  [Vp+H]        lanes [0:H] = w_lin, lane [H] = b_lin
    H4 = 4 * H
    SB = S * Bp

    fused = params_ref[0:Vp, :]                       # (Vp, 4H)
    w_hh = params_ref[Vp:Vp + H, :]                   # (H, 4H)
    head = params_ref[Vp + H:Vp + H + 1, :]           # (1, 4H)

    # Exact one-hot row select on the MXU: gx already contains the bias and the
    # x2 pre-scale on the g-gate columns.  Kept as (S*Bp, 4H); no reshapes.
    tok = tok_ref[...]                                # (SB, 1) int32
    vocab_iota = jax.lax.broadcasted_iota(jnp.int32, (SB, Vp), 1)
    one_hot = (vocab_iota == tok).astype(jnp.float32)             # (SB, Vp)
    gx_all = jnp.dot(one_hot, fused,
                     preferred_element_type=jnp.float32)          # (SB, 4H)

    h = jnp.zeros((Bp, H), jnp.float32)
    c = jnp.zeros((Bp, H), jnp.float32)
    acc = jnp.zeros((Bp, H), jnp.float32)

    # Fully unrolled serial recurrence (S is small and static).  Per step only
    # the (Bp,H)x(H,4H) matmul on the h-dependence plus one full-vreg sigmoid
    # and one tanh(c) sit on the critical path.
    for t in range(S):
        gates = gx_all[t * Bp:(t + 1) * Bp, :] + jnp.dot(
            h, w_hh, preferred_element_type=jnp.float32)          # (Bp, 4H)
        s = jax.nn.sigmoid(gates)       # single EUP dispatch over all 4 gates
        i_g = s[:, 0:H]
        f_g = s[:, H:2 * H]
        o_g = s[:, 2 * H:3 * H]
        g_g = 2.0 * s[:, 3 * H:4 * H] - 1.0   # tanh(x) = 2*sigmoid(2x) - 1
        c = f_g * c + i_g * g_g
        h = o_g * jnp.tanh(c)
        acc = acc + h

    mean_h = acc * (1.0 / S)                          # (Bp, H)
    # Linear head with out_features == 1: VPU multiply + cross-lane reduce.
    w_lin = head[:, 0:H]                              # (1, H)
    b_lin = head[:, H:H + 1]                          # (1, 1)
    logits = jnp.sum(mean_h * w_lin, axis=-1, keepdims=True) + b_lin
    out_ref[...] = jax.nn.sigmoid(logits).astype(out_ref.dtype)


def pack_params(emb_table, w_ih, w_hh, b_ih, b_hh, w_lin, b_lin):
    """Fold embedding + W_ih + bias into a fused table and pack everything into
    one lane-dense (Vp + H + 1, 4H) f32 slab for a single VMEM DMA.

    PyTorch layouts: w_ih (4H, E), w_hh (4H, H), biases (4H,), gate row order
    [i, f, g, o]; w_lin (1, H), b_lin (1,).  Kernel gate column order [i,f,o,g].
    """
    H = w_hh.shape[1]
    V = emb_table.shape[0]
    Vp = max(8, ((V + 7) // 8) * 8)

    perm = jnp.concatenate([jnp.arange(0, 2 * H),        # i, f
                            jnp.arange(3 * H, 4 * H),    # o
                            jnp.arange(2 * H, 3 * H)])   # g
    w_ih_t = w_ih[perm].T                                # (E, 4H)
    w_hh_t = w_hh[perm].T                                # (H, 4H)
    b = (b_ih + b_hh)[perm]                              # (4H,)

    # Fused token table: embedding row -> full input-gate pre-activation.
    fused = emb_table @ w_ih_t + b[None, :]              # (V, 4H)
    fused = jnp.pad(fused, ((0, Vp - V), (0, 0)))        # (Vp, 4H)

    # Pre-scale the g-gate columns by 2 (exact) so tanh(x) = 2*sigmoid(2x) - 1
    # needs no extra per-step scaling on the critical path.
    g_scale = jnp.concatenate([jnp.ones((3 * H,), jnp.float32),
                               jnp.full((H,), 2.0, jnp.float32)])
    fused = fused * g_scale[None, :]
    w_hh_t = w_hh_t * g_scale[None, :]

    # Head row: w_lin in lanes [0:H], b_lin in lane H.
    head = jnp.zeros((1, 4 * H), jnp.float32)
    head = head.at[0, :H].set(w_lin.reshape(-1))
    head = head.at[0, H].set(b_lin.reshape(-1)[0])

    slab = jnp.concatenate([fused, w_hh_t, head], axis=0)  # (Vp + H + 1, 4H)
    return slab, Vp


def lstm_classifier(x_tokens, params_slab, *, hidden, vocab_pad):
    """x_tokens: (B, S) int32. Returns sigmoid(linear(mean_t(lstm(embed(x)))))."""
    B, S = x_tokens.shape
    # Pad batch to the sublane width (8); padded rows (token id 0) are dropped.
    Bp = max(8, ((B + 7) // 8) * 8)
    if Bp != B:
        x_tokens = jnp.pad(x_tokens, ((0, Bp - B), (0, 0)))
    # Time-major flattened token ids (row = t*Bp + b); only a tiny int transpose.
    tok_tm = x_tokens.T.reshape(S * Bp, 1).astype(jnp.int32)

    kernel = functools.partial(lstm_kernel, S=S, Bp=Bp, H=hidden, Vp=vocab_pad)
    out = pl.pallas_call(
        kernel,
        out_shape=jax.ShapeDtypeStruct((Bp, 1), jnp.float32),
        in_specs=[pl.BlockSpec(memory_space=pltpu.MemorySpace.VMEM)] * 2,
        out_specs=pl.BlockSpec(memory_space=pltpu.MemorySpace.VMEM),
    )(tok_tm, params_slab)
    return out[:B]


def reference(x_tokens, emb_table, w_ih, w_hh, b_ih, b_hh, w_lin, b_lin):
    """Pure-JAX reference of the PyTorch forward (raw PyTorch-layout params)."""
    embed = jnp.take(emb_table, x_tokens, axis=0)         # (B, S, E)
    B, S, _ = embed.shape
    H = w_hh.shape[1]
    h = jnp.zeros((B, H), jnp.float32)
    c = jnp.zeros((B, H), jnp.float32)
    hs = []
    for t in range(S):
        gates = embed[:, t, :] @ w_ih.T + h @ w_hh.T + b_ih + b_hh
        i_g = jax.nn.sigmoid(gates[:, 0:H])
        f_g = jax.nn.sigmoid(gates[:, H:2 * H])
        g_g = jnp.tanh(gates[:, 2 * H:3 * H])
        o_g = jax.nn.sigmoid(gates[:, 3 * H:4 * H])
        c = f_g * c + i_g * g_g
        h = o_g * jnp.tanh(c)
        hs.append(h)
    mean_h = jnp.mean(jnp.stack(hs, axis=1), axis=1)
    return jax.nn.sigmoid(mean_h @ w_lin.T + b_lin)


if __name__ == "__main__":
    # Small deterministic shapes consistent with the module.
    vocab_size = 20
    embed_dim = 50
    hidden_size = 32
    linear_hidden_size = 1
    batch = 4
    seq = 8

    key = jax.random.PRNGKey(0)
    k_emb, k_ih, k_hh, k_bih, k_bhh, k_wl, k_bl, k_x = jax.random.split(key, 8)

    # Embedding table ("weights_mat"); padding_idx=0 -> row 0 is zero.
    emb_table = jax.random.normal(k_emb, (vocab_size, embed_dim), jnp.float32)
    emb_table = emb_table.at[0].set(0.0)

    # LSTM params in PyTorch layout (gate row order i, f, g, o).
    bound = 1.0 / jnp.sqrt(hidden_size)
    w_ih = jax.random.uniform(k_ih, (4 * hidden_size, embed_dim),
                              jnp.float32, -bound, bound)
    w_hh = jax.random.uniform(k_hh, (4 * hidden_size, hidden_size),
                              jnp.float32, -bound, bound)
    b_ih = jax.random.uniform(k_bih, (4 * hidden_size,), jnp.float32,
                              -bound, bound)
    b_hh = jax.random.uniform(k_bhh, (4 * hidden_size,), jnp.float32,
                              -bound, bound)

    # Linear head (PyTorch layout (out, in)).
    lin_bound = 1.0 / jnp.sqrt(hidden_size)
    w_lin = jax.random.uniform(k_wl, (linear_hidden_size, hidden_size),
                               jnp.float32, -lin_bound, lin_bound)
    b_lin = jax.random.uniform(k_bl, (linear_hidden_size,), jnp.float32,
                               -lin_bound, lin_bound)

    # Host-side parameter packing: fused token table + W_hh + head in one slab.
    params_slab, vocab_pad = pack_params(emb_table, w_ih, w_hh, b_ih, b_hh,
                                         w_lin, b_lin)

    # Input token ids (B, S), int32.
    x = jax.random.randint(k_x, (batch, seq), 0, vocab_size, dtype=jnp.int32)

    out = lstm_classifier(x, params_slab, hidden=hidden_size,
                          vocab_pad=vocab_pad)
    out = jax.block_until_ready(out)

    ref = reference(x, emb_table, w_ih, w_hh, b_ih, b_hh, w_lin, b_lin)
    assert out.shape == (batch, linear_hidden_size)
    assert jnp.allclose(out, ref, atol=1e-5, rtol=1e-5), (out, ref)

    print("KERNEL_OK")
</pallas_src>

<mosaic_0001>
module attributes {stable_mosaic.version = 11 : i64} {
  func.func @lstm_kernel(%arg0: memref<64x1xi32, #tpu.memory_space<vmem>>, %arg1: memref<57x128xf32, #tpu.memory_space<vmem>>, %arg2: memref<8x1xf32, #tpu.memory_space<vmem>>) attributes {dimension_semantics = [], scalar_prefetch = 0 : i64, scratch_operands = 0 : i64, tpu.core_type = #tpu.core_type<tc>} {
    %c0 = arith.constant 0 : index
    %c0_0 = arith.constant 0 : index
    %0 = vector.load %arg1[%c0, %c0_0] : memref<57x128xf32, #tpu.memory_space<vmem>>, vector<24x128xf32>
    %c24 = arith.constant 24 : index
    %c0_1 = arith.constant 0 : index
    %1 = vector.load %arg1[%c24, %c0_1] : memref<57x128xf32, #tpu.memory_space<vmem>>, vector<32x128xf32>
    %c56 = arith.constant 56 : index
    %c0_2 = arith.constant 0 : index
    %2 = vector.load %arg1[%c56, %c0_2] : memref<57x128xf32, #tpu.memory_space<vmem>>, vector<1x128xf32>
    %c0_3 = arith.constant 0 : index
    %c0_4 = arith.constant 0 : index
    %3 = vector.load %arg0[%c0_3, %c0_4] : memref<64x1xi32, #tpu.memory_space<vmem>>, vector<64x1xi32>
    %4 = tpu.iota {dimensions = array<i32: 1>} : vector<64x24xi32>
    %5 = vector.broadcast %3 : vector<64x1xi32> to vector<64x24xi32>
    %6 = arith.cmpi eq, %4, %5 : vector<64x24xi32>
    %7 = arith.extui %6 : vector<64x24xi1> to vector<64x24xi32>
    %8 = arith.sitofp %7 : vector<64x24xi32> to vector<64x24xf32>
    %cst = arith.constant dense<0.000000e+00> : vector<64x128xf32>
    %9 = tpu.matmul %8, %0, %cst {dimension_numbers = #tpu.dot_dimension_numbers<[1], [0], [0], [1], [0, 0, 1, 1], [], []>} : vector<64x24xf32>, vector<24x128xf32>, vector<64x128xf32> -> vector<64x128xf32>
    %cst_5 = arith.constant 0.000000e+00 : f32
    %10 = vector.broadcast %cst_5 : f32 to vector<8x32xf32>
    %cst_6 = arith.constant 0.000000e+00 : f32
    %11 = vector.broadcast %cst_6 : f32 to vector<8x32xf32>
    %cst_7 = arith.constant 0.000000e+00 : f32
    %12 = vector.broadcast %cst_7 : f32 to vector<8x32xf32>
    %13 = vector.extract_strided_slice %9 {offsets = [0, 0], sizes = [8, 128], strides = [1, 1]} : vector<64x128xf32> to vector<8x128xf32>
    %cst_8 = arith.constant dense<0.000000e+00> : vector<8x128xf32>
    %14 = tpu.matmul %10, %1, %cst_8 {dimension_numbers = #tpu.dot_dimension_numbers<[1], [0], [0], [1], [0, 0, 1, 1], [], []>} : vector<8x32xf32>, vector<32x128xf32>, vector<8x128xf32> -> vector<8x128xf32>
    %15 = arith.addf %13, %14 : vector<8x128xf32>
    %16 = arith.negf %15 : vector<8x128xf32>
    %17 = math.exp %16 : vector<8x128xf32>
    %cst_9 = arith.constant 1.000000e+00 : f32
    %18 = vector.broadcast %cst_9 : f32 to vector<8x128xf32>
    %19 = arith.addf %18, %17 : vector<8x128xf32>
    %20 = arith.divf %18, %19 : vector<8x128xf32>
    %21 = vector.extract_strided_slice %20 {offsets = [0, 0], sizes = [8, 32], strides = [1, 1]} : vector<8x128xf32> to vector<8x32xf32>
    %22 = vector.extract_strided_slice %20 {offsets = [0, 32], sizes = [8, 32], strides = [1, 1]} : vector<8x128xf32> to vector<8x32xf32>
    %23 = vector.extract_strided_slice %20 {offsets = [0, 64], sizes = [8, 32], strides = [1, 1]} : vector<8x128xf32> to vector<8x32xf32>
    %24 = vector.extract_strided_slice %20 {offsets = [0, 96], sizes = [8, 32], strides = [1, 1]} : vector<8x128xf32> to vector<8x32xf32>
    %cst_10 = arith.constant 2.000000e+00 : f32
    %25 = vector.broadcast %cst_10 : f32 to vector<8x32xf32>
    %26 = arith.mulf %25, %24 : vector<8x32xf32>
    %cst_11 = arith.constant 1.000000e+00 : f32
    %27 = vector.broadcast %cst_11 : f32 to vector<8x32xf32>
    %28 = arith.subf %26, %27 : vector<8x32xf32>
    %29 = arith.mulf %22, %11 : vector<8x32xf32>
    %30 = arith.mulf %21, %28 : vector<8x32xf32>
    %31 = arith.addf %29, %30 : vector<8x32xf32>
    %32 = math.tanh %31 : vector<8x32xf32>
    %33 = arith.mulf %23, %32 : vector<8x32xf32>
    %34 = arith.addf %12, %33 : vector<8x32xf32>
    %35 = vector.extract_strided_slice %9 {offsets = [8, 0], sizes = [8, 128], strides = [1, 1]} : vector<64x128xf32> to vector<8x128xf32>
    %cst_12 = arith.constant dense<0.000000e+00> : vector<8x128xf32>
    %36 = tpu.matmul %33, %1, %cst_12 {dimension_numbers = #tpu.dot_dimension_numbers<[1], [0], [0], [1], [0, 0, 1, 1], [], []>} : vector<8x32xf32>, vector<32x128xf32>, vector<8x128xf32> -> vector<8x128xf32>
    %37 = arith.addf %35, %36 : vector<8x128xf32>
    %38 = arith.negf %37 : vector<8x128xf32>
    %39 = math.exp %38 : vector<8x128xf32>
    %cst_13 = arith.constant 1.000000e+00 : f32
    %40 = vector.broadcast %cst_13 : f32 to vector<8x128xf32>
    %41 = arith.addf %40, %39 : vector<8x128xf32>
    %42 = arith.divf %40, %41 : vector<8x128xf32>
    %43 = vector.extract_strided_slice %42 {offsets = [0, 0], sizes = [8, 32], strides = [1, 1]} : vector<8x128xf32> to vector<8x32xf32>
    %44 = vector.extract_strided_slice %42 {offsets = [0, 32], sizes = [8, 32], strides = [1, 1]} : vector<8x128xf32> to vector<8x32xf32>
    %45 = vector.extract_strided_slice %42 {offsets = [0, 64], sizes = [8, 32], strides = [1, 1]} : vector<8x128xf32> to vector<8x32xf32>
    %46 = vector.extract_strided_slice %42 {offsets = [0, 96], sizes = [8, 32], strides = [1, 1]} : vector<8x128xf32> to vector<8x32xf32>
    %cst_14 = arith.constant 2.000000e+00 : f32
    %47 = vector.broadcast %cst_14 : f32 to vector<8x32xf32>
    %48 = arith.mulf %47, %46 : vector<8x32xf32>
    %cst_15 = arith.constant 1.000000e+00 : f32
    %49 = vector.broadcast %cst_15 : f32 to vector<8x32xf32>
    %50 = arith.subf %48, %49 : vector<8x32xf32>
    %51 = arith.mulf %44, %31 : vector<8x32xf32>
    %52 = arith.mulf %43, %50 : vector<8x32xf32>
    %53 = arith.addf %51, %52 : vector<8x32xf32>
    %54 = math.tanh %53 : vector<8x32xf32>
    %55 = arith.mulf %45, %54 : vector<8x32xf32>
    %56 = arith.addf %34, %55 : vector<8x32xf32>
    %57 = vector.extract_strided_slice %9 {offsets = [16, 0], sizes = [8, 128], strides = [1, 1]} : vector<64x128xf32> to vector<8x128xf32>
    %cst_16 = arith.constant dense<0.000000e+00> : vector<8x128xf32>
    %58 = tpu.matmul %55, %1, %cst_16 {dimension_numbers = #tpu.dot_dimension_numbers<[1], [0], [0], [1], [0, 0, 1, 1], [], []>} : vector<8x32xf32>, vector<32x128xf32>, vector<8x128xf32> -> vector<8x128xf32>
    %59 = arith.addf %57, %58 : vector<8x128xf32>
    %60 = arith.negf %59 : vector<8x128xf32>
    %61 = math.exp %60 : vector<8x128xf32>
    %cst_17 = arith.constant 1.000000e+00 : f32
    %62 = vector.broadcast %cst_17 : f32 to vector<8x128xf32>
    %63 = arith.addf %62, %61 : vector<8x128xf32>
    %64 = arith.divf %62, %63 : vector<8x128xf32>
    %65 = vector.extract_strided_slice %64 {offsets = [0, 0], sizes = [8, 32], strides = [1, 1]} : vector<8x128xf32> to vector<8x32xf32>
    %66 = vector.extract_strided_slice %64 {offsets = [0, 32], sizes = [8, 32], strides = [1, 1]} : vector<8x128xf32> to vector<8x32xf32>
    %67 = vector.extract_strided_slice %64 {offsets = [0, 64], sizes = [8, 32], strides = [1, 1]} : vector<8x128xf32> to vector<8x32xf32>
    %68 = vector.extract_strided_slice %64 {offsets = [0, 96], sizes = [8, 32], strides = [1, 1]} : vector<8x128xf32> to vector<8x32xf32>
    %cst_18 = arith.constant 2.000000e+00 : f32
    %69 = vector.broadcast %cst_18 : f32 to vector<8x32xf32>
    %70 = arith.mulf %69, %68 : vector<8x32xf32>
    %cst_19 = arith.constant 1.000000e+00 : f32
    %71 = vector.broadcast %cst_19 : f32 to vector<8x32xf32>
    %72 = arith.subf %70, %71 : vector<8x32xf32>
    %73 = arith.mulf %66, %53 : vector<8x32xf32>
    %74 = arith.mulf %65, %72 : vector<8x32xf32>
    %75 = arith.addf %73, %74 : vector<8x32xf32>
    %76 = math.tanh %75 : vector<8x32xf32>
    %77 = arith.mulf %67, %76 : vector<8x32xf32>
    %78 = arith.addf %56, %77 : vector<8x32xf32>
    %79 = vector.extract_strided_slice %9 {offsets = [24, 0], sizes = [8, 128], strides = [1, 1]} : vector<64x128xf32> to vector<8x128xf32>
    %cst_20 = arith.constant dense<0.000000e+00> : vector<8x128xf32>
    %80 = tpu.matmul %77, %1, %cst_20 {dimension_numbers = #tpu.dot_dimension_numbers<[1], [0], [0], [1], [0, 0, 1, 1], [], []>} : vector<8x32xf32>, vector<32x128xf32>, vector<8x128xf32> -> vector<8x128xf32>
    %81 = arith.addf %79, %80 : vector<8x128xf32>
    %82 = arith.negf %81 : vector<8x128xf32>
    %83 = math.exp %82 : vector<8x128xf32>
    %cst_21 = arith.constant 1.000000e+00 : f32
    %84 = vector.broadcast %cst_21 : f32 to vector<8x128xf32>
    %85 = arith.addf %84, %83 : vector<8x128xf32>
    %86 = arith.divf %84, %85 : vector<8x128xf32>
    %87 = vector.extract_strided_slice %86 {offsets = [0, 0], sizes = [8, 32], strides = [1, 1]} : vector<8x128xf32> to vector<8x32xf32>
    %88 = vector.extract_strided_slice %86 {offsets = [0, 32], sizes = [8, 32], strides = [1, 1]} : vector<8x128xf32> to vector<8x32xf32>
    %89 = vector.extract_strided_slice %86 {offsets = [0, 64], sizes = [8, 32], strides = [1, 1]} : vector<8x128xf32> to vector<8x32xf32>
    %90 = vector.extract_strided_slice %86 {offsets = [0, 96], sizes = [8, 32], strides = [1, 1]} : vector<8x128xf32> to vector<8x32xf32>
    %cst_22 = arith.constant 2.000000e+00 : f32
    %91 = vector.broadcast %cst_22 : f32 to vector<8x32xf32>
    %92 = arith.mulf %91, %90 : vector<8x32xf32>
    %cst_23 = arith.constant 1.000000e+00 : f32
    %93 = vector.broadcast %cst_23 : f32 to vector<8x32xf32>
    %94 = arith.subf %92, %93 : vector<8x32xf32>
    %95 = arith.mulf %88, %75 : vector<8x32xf32>
    %96 = arith.mulf %87, %94 : vector<8x32xf32>
    %97 = arith.addf %95, %96 : vector<8x32xf32>
    %98 = math.tanh %97 : vector<8x32xf32>
    %99 = arith.mulf %89, %98 : vector<8x32xf32>
    %100 = arith.addf %78, %99 : vector<8x32xf32>
    %101 = vector.extract_strided_slice %9 {offsets = [32, 0], sizes = [8, 128], strides = [1, 1]} : vector<64x128xf32> to vector<8x128xf32>
    %cst_24 = arith.constant dense<0.000000e+00> : vector<8x128xf32>
    %102 = tpu.matmul %99, %1, %cst_24 {dimension_numbers = #tpu.dot_dimension_numbers<[1], [0], [0], [1], [0, 0, 1, 1], [], []>} : vector<8x32xf32>, vector<32x128xf32>, vector<8x128xf32> -> vector<8x128xf32>
    %103 = arith.addf %101, %102 : vector<8x128xf32>
    %104 = arith.negf %103 : vector<8x128xf32>
    %105 = math.exp %104 : vector<8x128xf32>
    %cst_25 = arith.constant 1.000000e+00 : f32
    %106 = vector.broadcast %cst_25 : f32 to vector<8x128xf32>
    %107 = arith.addf %106, %105 : vector<8x128xf32>
    %108 = arith.divf %106, %107 : vector<8x128xf32>
    %109 = vector.extract_strided_slice %108 {offsets = [0, 0], sizes = [8, 32], strides = [1, 1]} : vector<8x128xf32> to vector<8x32xf32>
    %110 = vector.extract_strided_slice %108 {offsets = [0, 32], sizes = [8, 32], strides = [1, 1]} : vector<8x128xf32> to vector<8x32xf32>
    %111 = vector.extract_strided_slice %108 {offsets = [0, 64], sizes = [8, 32], strides = [1, 1]} : vector<8x128xf32> to vector<8x32xf32>
    %112 = vector.extract_strided_slice %108 {offsets = [0, 96], sizes = [8, 32], strides = [1, 1]} : vector<8x128xf32> to vector<8x32xf32>
    %cst_26 = arith.constant 2.000000e+00 : f32
    %113 = vector.broadcast %cst_26 : f32 to vector<8x32xf32>
    %114 = arith.mulf %113, %112 : vector<8x32xf32>
    %cst_27 = arith.constant 1.000000e+00 : f32
    %115 = vector.broadcast %cst_27 : f32 to vector<8x32xf32>
    %116 = arith.subf %114, %115 : vector<8x32xf32>
    %117 = arith.mulf %110, %97 : vector<8x32xf32>
    %118 = arith.mulf %109, %116 : vector<8x32xf32>
    %119 = arith.addf %117, %118 : vector<8x32xf32>
    %120 = math.tanh %119 : vector<8x32xf32>
    %121 = arith.mulf %111, %120 : vector<8x32xf32>
    %122 = arith.addf %100, %121 : vector<8x32xf32>
    %123 = vector.extract_strided_slice %9 {offsets = [40, 0], sizes = [8, 128], strides = [1, 1]} : vector<64x128xf32> to vector<8x128xf32>
    %cst_28 = arith.constant dense<0.000000e+00> : vector<8x128xf32>
    %124 = tpu.matmul %121, %1, %cst_28 {dimension_numbers = #tpu.dot_dimension_numbers<[1], [0], [0], [1], [0, 0, 1, 1], [], []>} : vector<8x32xf32>, vector<32x128xf32>, vector<8x128xf32> -> vector<8x128xf32>
    %125 = arith.addf %123, %124 : vector<8x128xf32>
    %126 = arith.negf %125 : vector<8x128xf32>
    %127 = math.exp %126 : vector<8x128xf32>
    %cst_29 = arith.constant 1.000000e+00 : f32
    %128 = vector.broadcast %cst_29 : f32 to vector<8x128xf32>
    %129 = arith.addf %128, %127 : vector<8x128xf32>
    %130 = arith.divf %128, %129 : vector<8x128xf32>
    %131 = vector.extract_strided_slice %130 {offsets = [0, 0], sizes = [8, 32], strides = [1, 1]} : vector<8x128xf32> to vector<8x32xf32>
    %132 = vector.extract_strided_slice %130 {offsets = [0, 32], sizes = [8, 32], strides = [1, 1]} : vector<8x128xf32> to vector<8x32xf32>
    %133 = vector.extract_strided_slice %130 {offsets = [0, 64], sizes = [8, 32], strides = [1, 1]} : vector<8x128xf32> to vector<8x32xf32>
    %134 = vector.extract_strided_slice %130 {offsets = [0, 96], sizes = [8, 32], strides = [1, 1]} : vector<8x128xf32> to vector<8x32xf32>
    %cst_30 = arith.constant 2.000000e+00 : f32
    %135 = vector.broadcast %cst_30 : f32 to vector<8x32xf32>
    %136 = arith.mulf %135, %134 : vector<8x32xf32>
    %cst_31 = arith.constant 1.000000e+00 : f32
    %137 = vector.broadcast %cst_31 : f32 to vector<8x32xf32>
    %138 = arith.subf %136, %137 : vector<8x32xf32>
    %139 = arith.mulf %132, %119 : vector<8x32xf32>
    %140 = arith.mulf %131, %138 : vector<8x32xf32>
    %141 = arith.addf %139, %140 : vector<8x32xf32>
    %142 = math.tanh %141 : vector<8x32xf32>
    %143 = arith.mulf %133, %142 : vector<8x32xf32>
    %144 = arith.addf %122, %143 : vector<8x32xf32>
    %145 = vector.extract_strided_slice %9 {offsets = [48, 0], sizes = [8, 128], strides = [1, 1]} : vector<64x128xf32> to vector<8x128xf32>
    %cst_32 = arith.constant dense<0.000000e+00> : vector<8x128xf32>
    %146 = tpu.matmul %143, %1, %cst_32 {dimension_numbers = #tpu.dot_dimension_numbers<[1], [0], [0], [1], [0, 0, 1, 1], [], []>} : vector<8x32xf32>, vector<32x128xf32>, vector<8x128xf32> -> vector<8x128xf32>
    %147 = arith.addf %145, %146 : vector<8x128xf32>
    %148 = arith.negf %147 : vector<8x128xf32>
    %149 = math.exp %148 : vector<8x128xf32>
    %cst_33 = arith.constant 1.000000e+00 : f32
    %150 = vector.broadcast %cst_33 : f32 to vector<8x128xf32>
    %151 = arith.addf %150, %149 : vector<8x128xf32>
    %152 = arith.divf %150, %151 : vector<8x128xf32>
    %153 = vector.extract_strided_slice %152 {offsets = [0, 0], sizes = [8, 32], strides = [1, 1]} : vector<8x128xf32> to vector<8x32xf32>
    %154 = vector.extract_strided_slice %152 {offsets = [0, 32], sizes = [8, 32], strides = [1, 1]} : vector<8x128xf32> to vector<8x32xf32>
    %155 = vector.extract_strided_slice %152 {offsets = [0, 64], sizes = [8, 32], strides = [1, 1]} : vector<8x128xf32> to vector<8x32xf32>
    %156 = vector.extract_strided_slice %152 {offsets = [0, 96], sizes = [8, 32], strides = [1, 1]} : vector<8x128xf32> to vector<8x32xf32>
    %cst_34 = arith.constant 2.000000e+00 : f32
    %157 = vector.broadcast %cst_34 : f32 to vector<8x32xf32>
    %158 = arith.mulf %157, %156 : vector<8x32xf32>
    %cst_35 = arith.constant 1.000000e+00 : f32
    %159 = vector.broadcast %cst_35 : f32 to vector<8x32xf32>
    %160 = arith.subf %158, %159 : vector<8x32xf32>
    %161 = arith.mulf %154, %141 : vector<8x32xf32>
    %162 = arith.mulf %153, %160 : vector<8x32xf32>
    %163 = arith.addf %161, %162 : vector<8x32xf32>
    %164 = math.tanh %163 : vector<8x32xf32>
    %165 = arith.mulf %155, %164 : vector<8x32xf32>
    %166 = arith.addf %144, %165 : vector<8x32xf32>
    %167 = vector.extract_strided_slice %9 {offsets = [56, 0], sizes = [8, 128], strides = [1, 1]} : vector<64x128xf32> to vector<8x128xf32>
    %cst_36 = arith.constant dense<0.000000e+00> : vector<8x128xf32>
    %168 = tpu.matmul %165, %1, %cst_36 {dimension_numbers = #tpu.dot_dimension_numbers<[1], [0], [0], [1], [0, 0, 1, 1], [], []>} : vector<8x32xf32>, vector<32x128xf32>, vector<8x128xf32> -> vector<8x128xf32>
    %169 = arith.addf %167, %168 : vector<8x128xf32>
    %170 = arith.negf %169 : vector<8x128xf32>
    %171 = math.exp %170 : vector<8x128xf32>
    %cst_37 = arith.constant 1.000000e+00 : f32
    %172 = vector.broadcast %cst_37 : f32 to vector<8x128xf32>
    %173 = arith.addf %172, %171 : vector<8x128xf32>
    %174 = arith.divf %172, %173 : vector<8x128xf32>
    %175 = vector.extract_strided_slice %174 {offsets = [0, 0], sizes = [8, 32], strides = [1, 1]} : vector<8x128xf32> to vector<8x32xf32>
    %176 = vector.extract_strided_slice %174 {offsets = [0, 32], sizes = [8, 32], strides = [1, 1]} : vector<8x128xf32> to vector<8x32xf32>
    %177 = vector.extract_strided_slice %174 {offsets = [0, 64], sizes = [8, 32], strides = [1, 1]} : vector<8x128xf32> to vector<8x32xf32>
    %178 = vector.extract_strided_slice %174 {offsets = [0, 96], sizes = [8, 32], strides = [1, 1]} : vector<8x128xf32> to vector<8x32xf32>
    %cst_38 = arith.constant 2.000000e+00 : f32
    %179 = vector.broadcast %cst_38 : f32 to vector<8x32xf32>
    %180 = arith.mulf %179, %178 : vector<8x32xf32>
    %cst_39 = arith.constant 1.000000e+00 : f32
    %181 = vector.broadcast %cst_39 : f32 to vector<8x32xf32>
    %182 = arith.subf %180, %181 : vector<8x32xf32>
    %183 = arith.mulf %176, %163 : vector<8x32xf32>
    %184 = arith.mulf %175, %182 : vector<8x32xf32>
    %185 = arith.addf %183, %184 : vector<8x32xf32>
    %186 = math.tanh %185 : vector<8x32xf32>
    %187 = arith.mulf %177, %186 : vector<8x32xf32>
    %188 = arith.addf %166, %187 : vector<8x32xf32>
    %cst_40 = arith.constant 1.250000e-01 : f32
    %189 = vector.broadcast %cst_40 : f32 to vector<8x32xf32>
    %190 = arith.mulf %188, %189 : vector<8x32xf32>
    %191 = vector.extract_strided_slice %2 {offsets = [0, 0], sizes = [1, 32], strides = [1, 1]} : vector<1x128xf32> to vector<1x32xf32>
    %192 = vector.extract_strided_slice %2 {offsets = [0, 32], sizes = [1, 1], strides = [1, 1]} : vector<1x128xf32> to vector<1x1xf32>
    %193 = vector.broadcast %191 : vector<1x32xf32> to vector<8x32xf32>
    %194 = arith.mulf %190, %193 : vector<8x32xf32>
    %cst_41 = arith.constant dense<0.000000e+00> : vector<8xf32>
    %195 = vector.multi_reduction <add>, %194, %cst_41 [1] : vector<8x32xf32> to vector<8xf32>
    %196 = vector.shape_cast %195 : vector<8xf32> to vector<8x1xf32>
    %197 = vector.broadcast %192 : vector<1x1xf32> to vector<8x1xf32>
    %198 = arith.addf %196, %197 : vector<8x1xf32>
    %199 = arith.negf %198 : vector<8x1xf32>
    %200 = math.exp %199 : vector<8x1xf32>
    %cst_42 = arith.constant 1.000000e+00 : f32
    %201 = vector.broadcast %cst_42 : f32 to vector<8x1xf32>
    %202 = arith.addf %201, %200 : vector<8x1xf32>
    %203 = arith.divf %201, %202 : vector<8x1xf32>
    %c0_43 = arith.constant 0 : index
    %c0_44 = arith.constant 0 : index
    %204 = vector.load %arg2[%c0_43, %c0_44] : memref<8x1xf32, #tpu.memory_space<vmem>>, vector<8x1xf32>
    tpu.vector_store %arg2[%c0_43, %c0_44], %203 {strides = array<i32>} : memref<8x1xf32, #tpu.memory_space<vmem>>, vector<8x1xf32>,
    return
  }
}

</mosaic_0001>

<llo_original>
// kernel: tpu_custom_call.1
$region0: #{tpu_custom_call.1}
  #allocation0 [shape = 'u32[]', space=smem, size = 0x4, offset = 0x4, fixed_abs, tag = 'smem constant byte address 0x4 - core index']
  #allocation1 [shape = 'u32[72,128]{1,0:T(1,128)}', space=vmem, size = 0x9000, scoped, tag = 'internal scratch']
  %s0 = inlined_call_operand.vmem [shape: s32[64,1], index: 0, kind: input, shape index: {}]
  %s1 = inlined_call_operand.vmem [shape: f32[57,128], index: 1, kind: input, shape index: {}]
  %s2 = inlined_call_operand.vmem [shape: f32[8,1], index: 2, kind: output, shape index: {}]
  %s3 = sld [smem:[#allocation0]]
  $region18: #{tpu_custom_call.1} parent=0
    _
  %s5 = ssub.s32 1, %s3
  %s6 = scalar_select 0, %s5, %s3
  // Predicated region
  $region2: #{tpu_custom_call.1} parent=0 // pred_check
    _
  $region3: #{tpu_custom_call.1} parent=0 // pred_check_branch
    %8 = sbr.rel (0) target = $region5
  $region4: #{tpu_custom_call.1} parent=0 // pred_region
    _
  $region5: #{tpu_custom_call.1} parent=0 // pred_fallthru
    _
  // Predicated region
  $region6: #{tpu_custom_call.1} parent=0 // pred_check
    _
  $region7: #{tpu_custom_call.1} parent=0 // pred_check_branch
    %10 = sbr.rel (0) target = $region9
  $region8: #{tpu_custom_call.1} parent=0 // pred_region
    _
  $region9: #{tpu_custom_call.1} parent=0 // pred_fallthru
    _
  %v11 = vld [vmem:[%s1] sm:$0xff]
  %v12 = vld [vmem:[%s1 + $0x8] sm:$0xff]
  %v13 = vld [vmem:[%s1 + $0x10] sm:$0xff]
  %v14 = vld [vmem:[%s1 + $0x18] sm:$0xff]
  %v15 = vld [vmem:[%s1 + $0x20] sm:$0xff]
  %v16 = vld [vmem:[%s1 + $0x28] sm:$0xff]
  %v17 = vld [vmem:[%s1 + $0x30] sm:$0xff]
  %v18 = vld [vmem:[%s1 + $0x38] sm:$0x1]
  %v19 = vld [vmem:[%s0] sm:$0xff]
  %v20 = vld [vmem:[%s0 + $0x8] sm:$0xff]
  %v21 = vld [vmem:[%s0 + $0x10] sm:$0xff]
  %v22 = vld [vmem:[%s0 + $0x18] sm:$0xff]
  %v23 = vld [vmem:[%s0 + $0x20] sm:$0xff]
  %v24 = vld [vmem:[%s0 + $0x28] sm:$0xff]
  %v25 = vld [vmem:[%s0 + $0x30] sm:$0xff]
  %v26 = vld [vmem:[%s0 + $0x38] sm:$0xff]
  %v27 = vlaneseq
  %v28 = vand.u32 %v27, 127
  %29 = vset.pattern.permute.xlu0 0
  %30 = vperm.xlu0 %29, %v19
  %v31 = vpop.permute.xlu0 %30
  %32 = vset.pattern.permute.xlu0 0
  %33 = vperm.xlu0 %32, %v20
  %v34 = vpop.permute.xlu0 %33
  %35 = vset.pattern.permute.xlu0 0
  %36 = vperm.xlu0 %35, %v21
  %v37 = vpop.permute.xlu0 %36
  %38 = vset.pattern.permute.xlu0 0
  %39 = vperm.xlu0 %38, %v22
  %v40 = vpop.permute.xlu0 %39
  %41 = vset.pattern.permute.xlu0 0
  %42 = vperm.xlu0 %41, %v23
  %v43 = vpop.permute.xlu0 %42
  %44 = vset.pattern.permute.xlu0 0
  %45 = vperm.xlu0 %44, %v24
  %v46 = vpop.permute.xlu0 %45
  %47 = vset.pattern.permute.xlu0 0
  %48 = vperm.xlu0 %47, %v25
  %v49 = vpop.permute.xlu0 %48
  %50 = vset.pattern.permute.xlu0 0
  %51 = vperm.xlu0 %50, %v26
  %v52 = vpop.permute.xlu0 %51
  %vm53 = vcmp.eq.s32.totalorder %v28, %v31
  %vm54 = vcmp.eq.s32.totalorder %v28, %v34
  %vm55 = vcmp.eq.s32.totalorder %v28, %v37
  %vm56 = vcmp.eq.s32.totalorder %v28, %v40
  %vm57 = vcmp.eq.s32.totalorder %v28, %v43
  %vm58 = vcmp.eq.s32.totalorder %v28, %v46
  %vm59 = vcmp.eq.s32.totalorder %v28, %v49
  %vm60 = vcmp.eq.s32.totalorder %v28, %v52
  %v61 = vsel %vm53, 1, 0
  %v62 = vsel %vm54, 1, 0
  %v63 = vsel %vm55, 1, 0
  %v64 = vsel %vm56, 1, 0
  %v65 = vsel %vm57, 1, 0
  %v66 = vsel %vm58, 1, 0
  %v67 = vsel %vm59, 1, 0
  %v68 = vsel %vm60, 1, 0
  %v69 = vcvt.s32.f32 %v61
  %v70 = vcvt.s32.f32 %v62
  %v71 = vcvt.s32.f32 %v63
  %v72 = vcvt.s32.f32 %v64
  %v73 = vcvt.s32.f32 %v65
  %v74 = vcvt.s32.f32 %v66
  %v75 = vcvt.s32.f32 %v67
  %v76 = vcvt.s32.f32 %v68
  %vm77 = vcmask 195584
  %v79 = vsel %vm77, %v69, 0
  %v82 = vsel %vm77, %v70, 0
  %v85 = vsel %vm77, %v71, 0
  %v88 = vsel %vm77, %v72, 0
  %v91 = vsel %vm77, %v73, 0
  %v94 = vsel %vm77, %v74, 0
  %v97 = vsel %vm77, %v75, 0
  %v100 = vsel %vm77, %v76, 0
  %102 = vmatpush.msra.mxu0 0.0
  %103 = vmatpush.msra.mxu0 0.0
  %104 = vmatpush.msra.mxu0 0.0
  %105 = vmatpush.msra.mxu0 0.0
  %106 = vmatpush.msra.mxu0 0.0
  %107 = vmatpush.msra.mxu0 0.0
  %108 = vmatpush.msra.mxu0 0.0
  %109 = vmatpush.msra.mxu0 0.0
  %110 = vmatpush.msra.mxu0 0.0
  %111 = vmatpush.msra.mxu0 0.0
  %112 = vmatpush.msra.mxu0 0.0
  %113 = vmatpush.msra.mxu0 0.0
  %114 = vmatpush.msra.mxu0 0.0
  %115 = vmatpush.msra.mxu0 %v13
  %116 = vmatpush.msra.mxu0 %v12
  %117 = vmatpush.msra.mxu0 %v11
  %118 = vmatmul.f32.gmra.mxu0 %v79
  %v119 = vpop.f32.mrf.mxu0
  %v120 = vadd.f32 0.0, %v119
  %121 = vmatmul.f32.gmra.mxu0 %v82
  %v122 = vpop.f32.mrf.mxu0
  %v123 = vadd.f32 0.0, %v122
  %124 = vmatmul.f32.gmra.mxu0 %v85
  %v125 = vpop.f32.mrf.mxu0
  %v126 = vadd.f32 0.0, %v125
  %127 = vmatmul.f32.gmra.mxu0 %v88
  %v128 = vpop.f32.mrf.mxu0
  %v129 = vadd.f32 0.0, %v128
  %130 = vmatmul.f32.gmra.mxu0 %v91
  %v131 = vpop.f32.mrf.mxu0
  %v132 = vadd.f32 0.0, %v131
  %133 = vmatmul.f32.gmra.mxu0 %v94
  %v134 = vpop.f32.mrf.mxu0
  %v135 = vadd.f32 0.0, %v134
  %136 = vmatmul.f32.gmra.mxu0 %v97
  %v137 = vpop.f32.mrf.mxu0
  %v138 = vadd.f32 0.0, %v137
  %139 = vmatmul.f32.gmra.mxu0 %v100
  %v140 = vpop.f32.mrf.mxu0
  %v141 = vadd.f32 0.0, %v140
  %142 = vdwg.mxu0
  %vm143 = vcmask 261120
  %v145 = vsel %vm143, 0.0, 0
  %147 = vmatpush.msra.mxu0 0.0
  %148 = vmatpush.msra.mxu0 0.0
  %149 = vmatpush.msra.mxu0 0.0
  %150 = vmatpush.msra.mxu0 0.0
  %151 = vmatpush.msra.mxu0 0.0
  %152 = vmatpush.msra.mxu0 0.0
  %153 = vmatpush.msra.mxu0 0.0
  %154 = vmatpush.msra.mxu0 0.0
  %155 = vmatpush.msra.mxu0 0.0
  %156 = vmatpush.msra.mxu0 0.0
  %157 = vmatpush.msra.mxu0 0.0
  %158 = vmatpush.msra.mxu0 0.0
  %159 = vmatpush.msra.mxu0 %v17
  %160 = vmatpush.msra.mxu0 %v16
  %161 = vmatpush.msra.mxu0 %v15
  %162 = vmatpush.msra.mxu0 %v14
  %163 = vmatmul.f32.gmra.mxu0 %v145
  %v164 = vpop.f32.mrf.mxu0
  %v165 = vadd.f32 0.0, %v164
  %166 = vdwg.mxu0
  %v167 = vadd.f32 %v120, %v165
  %v168 = vxor.u32 %v167, 2147483648
  %v169 = vmul.f32 %v168, 1.442695
  %v170 = vpow.pop %v169
  %v171 = vadd.f32 %v170, 1.0
  %v172 = vrcp.pop %v171
  %v173 = vmul.f32 %v171, %v172
  %v174 = vsub.f32 1.0, %v173
  %v175 = vmul.f32 %v172, %v174
  %v176 = vadd.f32 %v172, %v175
  %vm177 = vweird.f32 %v171
  %vm178 = vweird.f32 %v172
  %vm179 = vmor %vm177, %vm178
  %v180 = vsel %vm179, %v172, %v176
  %v181 = vand.u32 2147483647, %v171
  %vm182 = vcmp.eq.f32.partialorder %v181, 8.507059e+37
  %v183 = vand.u32 %v171, 2147483648
  %v184 = vor.u32 1.1754944e-38, %v183
  %v185 = vsel %vm182, %v184, %v180
  %v186 = vmul.f32 1.0, %v185
  %v187 = vmul.f32 %v186, 2.0
  %v188 = vsub.f32 %v187, 1.0
  %v189 = vmul.f32 %v186, 0.0
  %191 = vrot.lane.b32.xlu0 %v188, 32
  %v192 = vpop.permute.xlu0 %191
  %v194 = vmul.f32 %v186, %v192
  %196 = vrot.lane.b32.xlu0 %v194, 32
  %v197 = vpop.permute.xlu0 %196
  %v199 = vadd.f32 %v189, %v197
  %v200 = vtanh.pop %v199
  %202 = vrot.lane.b32.xlu0 %v200, 32
  %v203 = vpop.permute.xlu0 %202
  %v205 = vmul.f32 %v186, %v203
  %v206 = vadd.f32 %v205, 0.0
  %208 = vrot.lane.b32.xlu0 %v205, 64
  %v209 = vpop.permute.xlu0 %208
  %v210 = vsel %vm143, %v209, 0
  %212 = vmatpush.msra.mxu0 0.0
  %213 = vmatpush.msra.mxu0 0.0
  %214 = vmatpush.msra.mxu0 0.0
  %215 = vmatpush.msra.mxu0 0.0
  %216 = vmatpush.msra.mxu0 0.0
  %217 = vmatpush.msra.mxu0 0.0
  %218 = vmatpush.msra.mxu0 0.0
  %219 = vmatpush.msra.mxu0 0.0
  %220 = vmatpush.msra.mxu0 0.0
  %221 = vmatpush.msra.mxu0 0.0
  %222 = vmatpush.msra.mxu0 0.0
  %223 = vmatpush.msra.mxu0 0.0
  %224 = vmatpush.msra.mxu0 %v17
  %225 = vmatpush.msra.mxu0 %v16
  %226 = vmatpush.msra.mxu0 %v15
  %227 = vmatpush.msra.mxu0 %v14
  %228 = vmatmul.f32.gmra.mxu0 %v210
  %v229 = vpop.f32.mrf.mxu0
  %v230 = vadd.f32 0.0, %v229
  %231 = vdwg.mxu0
  %v232 = vadd.f32 %v123, %v230
  %v233 = vxor.u32 %v232, 2147483648
  %v234 = vmul.f32 %v233, 1.442695
  %v235 = vpow.pop %v234
  %v236 = vadd.f32 %v235, 1.0
  %v237 = vrcp.pop %v236
  %v238 = vmul.f32 %v236, %v237
  %v239 = vsub.f32 1.0, %v238
  %v240 = vmul.f32 %v237, %v239
  %v241 = vadd.f32 %v237, %v240
  %vm242 = vweird.f32 %v236
  %vm243 = vweird.f32 %v237
  %vm244 = vmor %vm242, %vm243
  %v245 = vsel %vm244, %v237, %v241
  %v246 = vand.u32 2147483647, %v236
  %vm247 = vcmp.eq.f32.partialorder %v246, 8.507059e+37
  %v248 = vand.u32 %v236, 2147483648
  %v249 = vor.u32 1.1754944e-38, %v248
  %v250 = vsel %vm247, %v249, %v245
  %v251 = vmul.f32 1.0, %v250
  %v252 = vmul.f32 %v251, 2.0
  %v253 = vsub.f32 %v252, 1.0
  %v254 = vmul.f32 %v251, %v199
  %256 = vrot.lane.b32.xlu0 %v253, 32
  %v257 = vpop.permute.xlu0 %256
  %v259 = vmul.f32 %v251, %v257
  %261 = vrot.lane.b32.xlu0 %v259, 32
  %v262 = vpop.permute.xlu0 %261
  %v264 = vadd.f32 %v254, %v262
  %v265 = vtanh.pop %v264
  %267 = vrot.lane.b32.xlu0 %v265, 32
  %v268 = vpop.permute.xlu0 %267
  %v270 = vmul.f32 %v251, %v268
  %v271 = vadd.f32 %v206, %v270
  %273 = vrot.lane.b32.xlu0 %v270, 64
  %v274 = vpop.permute.xlu0 %273
  %v275 = vsel %vm143, %v274, 0
  %277 = vmatpush.msra.mxu0 0.0
  %278 = vmatpush.msra.mxu0 0.0
  %279 = vmatpush.msra.mxu0 0.0
  %280 = vmatpush.msra.mxu0 0.0
  %281 = vmatpush.msra.mxu0 0.0
  %282 = vmatpush.msra.mxu0 0.0
  %283 = vmatpush.msra.mxu0 0.0
  %284 = vmatpush.msra.mxu0 0.0
  %285 = vmatpush.msra.mxu0 0.0
  %286 = vmatpush.msra.mxu0 0.0
  %287 = vmatpush.msra.mxu0 0.0
  %288 = vmatpush.msra.mxu0 0.0
  %289 = vmatpush.msra.mxu0 %v17
  %290 = vmatpush.msra.mxu0 %v16
  %291 = vmatpush.msra.mxu0 %v15
  %292 = vmatpush.msra.mxu0 %v14
  %293 = vmatmul.f32.gmra.mxu0 %v275
  %v294 = vpop.f32.mrf.mxu0
  %v295 = vadd.f32 0.0, %v294
  %296 = vdwg.mxu0
  %v297 = vadd.f32 %v126, %v295
  %v298 = vxor.u32 %v297, 2147483648
  %v299 = vmul.f32 %v298, 1.442695
  %v300 = vpow.pop %v299
  %v301 = vadd.f32 %v300, 1.0
  %v302 = vrcp.pop %v301
  %v303 = vmul.f32 %v301, %v302
  %v304 = vsub.f32 1.0, %v303
  %v305 = vmul.f32 %v302, %v304
  %v306 = vadd.f32 %v302, %v305
  %vm307 = vweird.f32 %v301
  %vm308 = vweird.f32 %v302
  %vm309 = vmor %vm307, %vm308
  %v310 = vsel %vm309, %v302, %v306
  %v311 = vand.u32 2147483647, %v301
  %vm312 = vcmp.eq.f32.partialorder %v311, 8.507059e+37
  %v313 = vand.u32 %v301, 2147483648
  %v314 = vor.u32 1.1754944e-38, %v313
  %v315 = vsel %vm312, %v314, %v310
  %v316 = vmul.f32 1.0, %v315
  %v317 = vmul.f32 %v316, 2.0
  %v318 = vsub.f32 %v317, 1.0
  %v319 = vmul.f32 %v316, %v264
  %321 = vrot.lane.b32.xlu0 %v318, 32
  %v322 = vpop.permute.xlu0 %321
  %v324 = vmul.f32 %v316, %v322
  %326 = vrot.lane.b32.xlu0 %v324, 32
  %v327 = vpop.permute.xlu0 %326
  %v329 = vadd.f32 %v319, %v327
  %v330 = vtanh.pop %v329
  %332 = vrot.lane.b32.xlu0 %v330, 32
  %v333 = vpop.permute.xlu0 %332
  %v335 = vmul.f32 %v316, %v333
  %v336 = vadd.f32 %v271, %v335
  %338 = vrot.lane.b32.xlu0 %v335, 64
  %v339 = vpop.permute.xlu0 %338
  %v340 = vsel %vm143, %v339, 0
  %342 = vmatpush.msra.mxu0 0.0
  %343 = vmatpush.msra.mxu0 0.0
  %344 = vmatpush.msra.mxu0 0.0
  %345 = vmatpush.msra.mxu0 0.0
  %346 = vmatpush.msra.mxu0 0.0
  %347 = vmatpush.msra.mxu0 0.0
  %348 = vmatpush.msra.mxu0 0.0
  %349 = vmatpush.msra.mxu0 0.0
  %350 = vmatpush.msra.mxu0 0.0
  %351 = vmatpush.msra.mxu0 0.0
  %352 = vmatpush.msra.mxu0 0.0
  %353 = vmatpush.msra.mxu0 0.0
  %354 = vmatpush.msra.mxu0 %v17
  %355 = vmatpush.msra.mxu0 %v16
  %356 = vmatpush.msra.mxu0 %v15
  %357 = vmatpush.msra.mxu0 %v14
  %358 = vmatmul.f32.gmra.mxu0 %v340
  %v359 = vpop.f32.mrf.mxu0
  %v360 = vadd.f32 0.0, %v359
  %361 = vdwg.mxu0
  %v362 = vadd.f32 %v129, %v360
  %v363 = vxor.u32 %v362, 2147483648
  %v364 = vmul.f32 %v363, 1.442695
  %v365 = vpow.pop %v364
  %v366 = vadd.f32 %v365, 1.0
  %v367 = vrcp.pop %v366
  %v368 = vmul.f32 %v366, %v367
  %v369 = vsub.f32 1.0, %v368
  %v370 = vmul.f32 %v367, %v369
  %v371 = vadd.f32 %v367, %v370
  %vm372 = vweird.f32 %v366
  %vm373 = vweird.f32 %v367
  %vm374 = vmor %vm372, %vm373
  %v375 = vsel %vm374, %v367, %v371
  %v376 = vand.u32 2147483647, %v366
  %vm377 = vcmp.eq.f32.partialorder %v376, 8.507059e+37
  %v378 = vand.u32 %v366, 2147483648
  %v379 = vor.u32 1.1754944e-38, %v378
  %v380 = vsel %vm377, %v379, %v375
  %v381 = vmul.f32 1.0, %v380
  %v382 = vmul.f32 %v381, 2.0
  %v383 = vsub.f32 %v382, 1.0
  %v384 = vmul.f32 %v381, %v329
  %386 = vrot.lane.b32.xlu0 %v383, 32
  %v387 = vpop.permute.xlu0 %386
  %v389 = vmul.f32 %v381, %v387
  %391 = vrot.lane.b32.xlu0 %v389, 32
  %v392 = vpop.permute.xlu0 %391
  %v394 = vadd.f32 %v384, %v392
  %v395 = vtanh.pop %v394
  %397 = vrot.lane.b32.xlu0 %v395, 32
  %v398 = vpop.permute.xlu0 %397
  %v400 = vmul.f32 %v381, %v398
  %v401 = vadd.f32 %v336, %v400
  %403 = vrot.lane.b32.xlu0 %v400, 64
  %v404 = vpop.permute.xlu0 %403
  %v405 = vsel %vm143, %v404, 0
  %407 = vmatpush.msra.mxu0 0.0
  %408 = vmatpush.msra.mxu0 0.0
  %409 = vmatpush.msra.mxu0 0.0
  %410 = vmatpush.msra.mxu0 0.0
  %411 = vmatpush.msra.mxu0 0.0
  %412 = vmatpush.msra.mxu0 0.0
  %413 = vmatpush.msra.mxu0 0.0
  %414 = vmatpush.msra.mxu0 0.0
  %415 = vmatpush.msra.mxu0 0.0
  %416 = vmatpush.msra.mxu0 0.0
  %417 = vmatpush.msra.mxu0 0.0
  %418 = vmatpush.msra.mxu0 0.0
  %419 = vmatpush.msra.mxu0 %v17
  %420 = vmatpush.msra.mxu0 %v16
  %421 = vmatpush.msra.mxu0 %v15
  %422 = vmatpush.msra.mxu0 %v14
  %423 = vmatmul.f32.gmra.mxu0 %v405
  %v424 = vpop.f32.mrf.mxu0
  %v425 = vadd.f32 0.0, %v424
  %426 = vdwg.mxu0
  %v427 = vadd.f32 %v132, %v425
  %v428 = vxor.u32 %v427, 2147483648
  %v429 = vmul.f32 %v428, 1.442695
  %v430 = vpow.pop %v429
  %v431 = vadd.f32 %v430, 1.0
  %v432 = vrcp.pop %v431
  %v433 = vmul.f32 %v431, %v432
  %v434 = vsub.f32 1.0, %v433
  %v435 = vmul.f32 %v432, %v434
  %v436 = vadd.f32 %v432, %v435
  %vm437 = vweird.f32 %v431
  %vm438 = vweird.f32 %v432
  %vm439 = vmor %vm437, %vm438
  %v440 = vsel %vm439, %v432, %v436
  %v441 = vand.u32 2147483647, %v431
  %vm442 = vcmp.eq.f32.partialorder %v441, 8.507059e+37
  %v443 = vand.u32 %v431, 2147483648
  %v444 = vor.u32 1.1754944e-38, %v443
  %v445 = vsel %vm442, %v444, %v440
  %v446 = vmul.f32 1.0, %v445
  %v447 = vmul.f32 %v446, 2.0
  %v448 = vsub.f32 %v447, 1.0
  %v449 = vmul.f32 %v446, %v394
  %451 = vrot.lane.b32.xlu0 %v448, 32
  %v452 = vpop.permute.xlu0 %451
  %v454 = vmul.f32 %v446, %v452
  %456 = vrot.lane.b32.xlu0 %v454, 32
  %v457 = vpop.permute.xlu0 %456
  %v459 = vadd.f32 %v449, %v457
  %v460 = vtanh.pop %v459
  %462 = vrot.lane.b32.xlu0 %v460, 32
  %v463 = vpop.permute.xlu0 %462
  %v465 = vmul.f32 %v446, %v463
  %v466 = vadd.f32 %v401, %v465
  %468 = vrot.lane.b32.xlu0 %v465, 64
  %v469 = vpop.permute.xlu0 %468
  %v470 = vsel %vm143, %v469, 0
  %472 = vmatpush.msra.mxu0 0.0
  %473 = vmatpush.msra.mxu0 0.0
  %474 = vmatpush.msra.mxu0 0.0
  %475 = vmatpush.msra.mxu0 0.0
  %476 = vmatpush.msra.mxu0 0.0
  %477 = vmatpush.msra.mxu0 0.0
  %478 = vmatpush.msra.mxu0 0.0
  %479 = vmatpush.msra.mxu0 0.0
  %480 = vmatpush.msra.mxu0 0.0
  %481 = vmatpush.msra.mxu0 0.0
  %482 = vmatpush.msra.mxu0 0.0
  %483 = vmatpush.msra.mxu0 0.0
  %484 = vmatpush.msra.mxu0 %v17
  %485 = vmatpush.msra.mxu0 %v16
  %486 = vmatpush.msra.mxu0 %v15
  %487 = vmatpush.msra.mxu0 %v14
  %488 = vmatmul.f32.gmra.mxu0 %v470
  %v489 = vpop.f32.mrf.mxu0
  %v490 = vadd.f32 0.0, %v489
  %491 = vdwg.mxu0
  %v492 = vadd.f32 %v135, %v490
  %v493 = vxor.u32 %v492, 2147483648
  %v494 = vmul.f32 %v493, 1.442695
  %v495 = vpow.pop %v494
  %v496 = vadd.f32 %v495, 1.0
  %v497 = vrcp.pop %v496
  %v498 = vmul.f32 %v496, %v497
  %v499 = vsub.f32 1.0, %v498
  %v500 = vmul.f32 %v497, %v499
  %v501 = vadd.f32 %v497, %v500
  %vm502 = vweird.f32 %v496
  %vm503 = vweird.f32 %v497
  %vm504 = vmor %vm502, %vm503
  %v505 = vsel %vm504, %v497, %v501
  %v506 = vand.u32 2147483647, %v496
  %vm507 = vcmp.eq.f32.partialorder %v506, 8.507059e+37
  %v508 = vand.u32 %v496, 2147483648
  %v509 = vor.u32 1.1754944e-38, %v508
  %v510 = vsel %vm507, %v509, %v505
  %v511 = vmul.f32 1.0, %v510
  %v512 = vmul.f32 %v511, 2.0
  %v513 = vsub.f32 %v512, 1.0
  %v514 = vmul.f32 %v511, %v459
  %516 = vrot.lane.b32.xlu0 %v513, 32
  %v517 = vpop.permute.xlu0 %516
  %v519 = vmul.f32 %v511, %v517
  %521 = vrot.lane.b32.xlu0 %v519, 32
  %v522 = vpop.permute.xlu0 %521
  %v524 = vadd.f32 %v514, %v522
  %v525 = vtanh.pop %v524
  %527 = vrot.lane.b32.xlu0 %v525, 32
  %v528 = vpop.permute.xlu0 %527
  %v530 = vmul.f32 %v511, %v528
  %v531 = vadd.f32 %v466, %v530
  %533 = vrot.lane.b32.xlu0 %v530, 64
  %v534 = vpop.permute.xlu0 %533
  %v535 = vsel %vm143, %v534, 0
  %537 = vmatpush.msra.mxu0 0.0
  %538 = vmatpush.msra.mxu0 0.0
  %539 = vmatpush.msra.mxu0 0.0
  %540 = vmatpush.msra.mxu0 0.0
  %541 = vmatpush.msra.mxu0 0.0
  %542 = vmatpush.msra.mxu0 0.0
  %543 = vmatpush.msra.mxu0 0.0
  %544 = vmatpush.msra.mxu0 0.0
  %545 = vmatpush.msra.mxu0 0.0
  %546 = vmatpush.msra.mxu0 0.0
  %547 = vmatpush.msra.mxu0 0.0
  %548 = vmatpush.msra.mxu0 0.0
  %549 = vmatpush.msra.mxu0 %v17
  %550 = vmatpush.msra.mxu0 %v16
  %551 = vmatpush.msra.mxu0 %v15
  %552 = vmatpush.msra.mxu0 %v14
  %553 = vmatmul.f32.gmra.mxu0 %v535
  %v554 = vpop.f32.mrf.mxu0
  %v555 = vadd.f32 0.0, %v554
  %556 = vdwg.mxu0
  %v557 = vadd.f32 %v138, %v555
  %v558 = vxor.u32 %v557, 2147483648
  %v559 = vmul.f32 %v558, 1.442695
  %v560 = vpow.pop %v559
  %v561 = vadd.f32 %v560, 1.0
  %v562 = vrcp.pop %v561
  %v563 = vmul.f32 %v561, %v562
  %v564 = vsub.f32 1.0, %v563
  %v565 = vmul.f32 %v562, %v564
  %v566 = vadd.f32 %v562, %v565
  %vm567 = vweird.f32 %v561
  %vm568 = vweird.f32 %v562
  %vm569 = vmor %vm567, %vm568
  %v570 = vsel %vm569, %v562, %v566
  %v571 = vand.u32 2147483647, %v561
  %vm572 = vcmp.eq.f32.partialorder %v571, 8.507059e+37
  %v573 = vand.u32 %v561, 2147483648
  %v574 = vor.u32 1.1754944e-38, %v573
  %v575 = vsel %vm572, %v574, %v570
  %v576 = vmul.f32 1.0, %v575
  %v577 = vmul.f32 %v576, 2.0
  %v578 = vsub.f32 %v577, 1.0
  %v579 = vmul.f32 %v576, %v524
  %581 = vrot.lane.b32.xlu0 %v578, 32
  %v582 = vpop.permute.xlu0 %581
  %v584 = vmul.f32 %v576, %v582
  %586 = vrot.lane.b32.xlu0 %v584, 32
  %v587 = vpop.permute.xlu0 %586
  %v589 = vadd.f32 %v579, %v587
  %v590 = vtanh.pop %v589
  %592 = vrot.lane.b32.xlu0 %v590, 32
  %v593 = vpop.permute.xlu0 %592
  %v595 = vmul.f32 %v576, %v593
  %v596 = vadd.f32 %v531, %v595
  %598 = vrot.lane.b32.xlu0 %v595, 64
  %v599 = vpop.permute.xlu0 %598
  %v600 = vsel %vm143, %v599, 0
  %602 = vmatpush.msra.mxu0 0.0
  %603 = vmatpush.msra.mxu0 0.0
  %604 = vmatpush.msra.mxu0 0.0
  %605 = vmatpush.msra.mxu0 0.0
  %606 = vmatpush.msra.mxu0 0.0
  %607 = vmatpush.msra.mxu0 0.0
  %608 = vmatpush.msra.mxu0 0.0
  %609 = vmatpush.msra.mxu0 0.0
  %610 = vmatpush.msra.mxu0 0.0
  %611 = vmatpush.msra.mxu0 0.0
  %612 = vmatpush.msra.mxu0 0.0
  %613 = vmatpush.msra.mxu0 0.0
  %614 = vmatpush.msra.mxu0 %v17
  %615 = vmatpush.msra.mxu0 %v16
  %616 = vmatpush.msra.mxu0 %v15
  %617 = vmatpush.msra.mxu0 %v14
  %618 = vmatmul.f32.gmra.mxu0 %v600
  %v619 = vpop.f32.mrf.mxu0
  %v620 = vadd.f32 0.0, %v619
  %621 = vdwg.mxu0
  %v622 = vadd.f32 %v141, %v620
  %v623 = vxor.u32 %v622, 2147483648
  %v624 = vmul.f32 %v623, 1.442695
  %v625 = vpow.pop %v624
  %v626 = vadd.f32 %v625, 1.0
  %v627 = vrcp.pop %v626
  %v628 = vmul.f32 %v626, %v627
  %v629 = vsub.f32 1.0, %v628
  %v630 = vmul.f32 %v627, %v629
  %v631 = vadd.f32 %v627, %v630
  %vm632 = vweird.f32 %v626
  %vm633 = vweird.f32 %v627
  %vm634 = vmor %vm632, %vm633
  %v635 = vsel %vm634, %v627, %v631
  %v636 = vand.u32 2147483647, %v626
  %vm637 = vcmp.eq.f32.partialorder %v636, 8.507059e+37
  %v638 = vand.u32 %v626, 2147483648
  %v639 = vor.u32 1.1754944e-38, %v638
  %v640 = vsel %vm637, %v639, %v635
  %v641 = vmul.f32 1.0, %v640
  %v642 = vmul.f32 %v641, 2.0
  %v643 = vsub.f32 %v642, 1.0
  %v644 = vmul.f32 %v641, %v589
  %646 = vrot.lane.b32.xlu0 %v643, 32
  %v647 = vpop.permute.xlu0 %646
  %v649 = vmul.f32 %v641, %v647
  %651 = vrot.lane.b32.xlu0 %v649, 32
  %v652 = vpop.permute.xlu0 %651
  %v654 = vadd.f32 %v644, %v652
  %v655 = vtanh.pop %v654
  %657 = vrot.lane.b32.xlu0 %v655, 32
  %v658 = vpop.permute.xlu0 %657
  %v660 = vmul.f32 %v641, %v658
  %v661 = vadd.f32 %v596, %v660
  %v662 = vmul.f32 %v661, 0.125
  %v663 = vperm.slane %v18, 0
  %665 = vrot.lane.b32.xlu0 %v663, 64
  %v666 = vpop.permute.xlu0 %665
  %v668 = vmul.f32 %v662, %v666
  %670 = vrot.lane.b32.xlu0 %v668, 64
  %v671 = vpop.permute.xlu0 %670
  %v673 = vsel %vm143, %v671, 0.0
  %674 = vadd.xlane.f32.xlu0 %v673
  %v675 = vpop.xlane.xlu0 %674
  %v676 = vadd.f32 %v675, %v663
  %v677 = vxor.u32 %v676, 2147483648
  %v678 = vmul.f32 %v677, 1.442695
  %v679 = vpow.pop %v678
  %v680 = vadd.f32 %v679, 1.0
  %v681 = vrcp.pop %v680
  %v682 = vmul.f32 %v680, %v681
  %v683 = vsub.f32 1.0, %v682
  %v684 = vmul.f32 %v681, %v683
  %v685 = vadd.f32 %v681, %v684
  %vm686 = vweird.f32 %v680
  %vm687 = vweird.f32 %v681
  %vm688 = vmor %vm686, %vm687
  %v689 = vsel %vm688, %v681, %v685
  %v690 = vand.u32 2147483647, %v680
  %vm691 = vcmp.eq.f32.partialorder %v690, 8.507059e+37
  %v692 = vand.u32 %v680, 2147483648
  %v693 = vor.u32 1.1754944e-38, %v692
  %v694 = vsel %vm691, %v693, %v689
  %v695 = vmul.f32 1.0, %v694
  %697 = vrot.lane.b32.xlu0 %v695, 96
  %v698 = vpop.permute.xlu0 %697
  %vm700 = vcmask 7168
  %701 = vst.msk [vmem:[%s2] sm:$0xff] %vm700, %v698
  // Predicated region
  $region10: #{tpu_custom_call.1} parent=0 // pred_check
    _
  $region11: #{tpu_custom_call.1} parent=0 // pred_check_branch
    %703 = sbr.rel (0) target = $region13
  $region12: #{tpu_custom_call.1} parent=0 // pred_region
    _
  $region13: #{tpu_custom_call.1} parent=0 // pred_fallthru
    _
  // Predicated region
  $region14: #{tpu_custom_call.1} parent=0 // pred_check
    _
  $region15: #{tpu_custom_call.1} parent=0 // pred_check_branch
    %705 = sbr.rel (0) target = $region17
  $region16: #{tpu_custom_call.1} parent=0 // pred_region
    _
  $region17: #{tpu_custom_call.1} parent=0 // pred_fallthru
    _

</llo_original>
